<compile_context>
chip_gen: v5e
topology: v5e:2x2
jax: 0.10.0
libtpu: 0.0.40
codegen_flags: <defaults>
</compile_context>

<pallas_src>
import functools

import numpy as np
import jax
import jax.numpy as jnp
from jax.experimental import pallas as pl
from jax.experimental.pallas import tpu as pltpu


# Rows of the packed stats slab (shape (8, D), one full sublane tile).
_ROW_MEAN, _ROW_VAR, _ROW_LOGDET = 0, 1, 2

_LANES = 128
_VMEM_WORKING_SET_BUDGET = 24 * 1024 * 1024   # conservative for v7x (64 MiB phys)
_VMEM_LIMIT_BYTES = 48 * 1024 * 1024


def _round_up(a, b):
    return (a + b - 1) // b * b


def _pick_tile_d(batch, d, x_bytes):
    """Largest 128-multiple feature tile whose (B, tile_d) working set fits VMEM."""
    if d <= _LANES:
        return d                                   # tiny-D: one full-width block

    def cost(td):                                  # double-buffered in + out + f32 temps
        return batch * td * (2 * x_bytes + 2 * x_bytes + 2 * 4)

    td = _LANES
    while (td * 2 <= _round_up(d, _LANES)
           and cost(td * 2) <= _VMEM_WORKING_SET_BUDGET):
        td *= 2
    return td


def _pick_tile_b(batch, tile_d, x_bytes):
    """Batch tile for the eval affine kernel (no reduction, so batch can tile too)."""
    cost_per_row = tile_d * (2 * x_bytes + 2 * x_bytes + 4)
    if batch * cost_per_row <= _VMEM_WORKING_SET_BUDGET:
        return batch
    rows = max(256, (_VMEM_WORKING_SET_BUDGET // cost_per_row) // 256 * 256)
    return min(batch, rows)


# ----------------------------------------------------------------------------
# Fused training kernel: per feature-tile stats + finalize + normalize.
#   One D-tile per grid step; the whole batch is resident, so the reduction is
#   exact two-pass and x is touched exactly once.
# ----------------------------------------------------------------------------
def _fused_train_kernel(x_ref, lg_ref, bt_ref, y_ref, stats_ref, *, valid_d, eps):
    j = pl.program_id(0)
    b, td = x_ref.shape

    x = x_ref[...].astype(jnp.float32)                            # (B, td)
    inv_n = 1.0 / b
    mean = jnp.sum(x, axis=0, keepdims=True) * inv_n              # (1, td)
    centered = x - mean
    var = jnp.sum(centered * centered, axis=0, keepdims=True) * inv_n + eps

    lg = lg_ref[...]                                              # (1, td) f32
    scale = jnp.exp(lg) * jax.lax.rsqrt(var)
    y_ref[...] = (centered * scale + bt_ref[...]).astype(y_ref.dtype)

    # Per-column logdet terms; mask columns past the true feature count so a
    # ragged last D-tile cannot contaminate the sum.
    col = jax.lax.broadcasted_iota(jnp.int32, (1, td), 1) + j * td
    ld_terms = jnp.where(col < valid_d, lg - 0.5 * jnp.log(var), 0.0)

    stats_ref[_ROW_MEAN:_ROW_MEAN + 1, :] = mean
    stats_ref[_ROW_VAR:_ROW_VAR + 1, :] = var
    stats_ref[_ROW_LOGDET:_ROW_LOGDET + 1, :] = ld_terms
    stats_ref[_ROW_LOGDET + 1:8, :] = jnp.zeros((8 - _ROW_LOGDET - 1, td),
                                                jnp.float32)


# ----------------------------------------------------------------------------
# Eval kernel: pure per-element FMA  y = x * scale + shift  (both axes parallel).
# ----------------------------------------------------------------------------
def _affine_kernel(x_ref, scale_ref, shift_ref, y_ref):
    y_ref[...] = (x_ref[...].astype(jnp.float32) * scale_ref[...]
                  + shift_ref[...]).astype(y_ref.dtype)


# ----------------------------------------------------------------------------
# Wrapper: BatchNormFlow forward, mode='direct'.
# ----------------------------------------------------------------------------
def batch_norm_flow_direct(x, log_gamma, beta, running_mean, running_var, *,
                           momentum=0.0, eps=1e-5, training=True):
    """Returns (y, logdet, new_running_mean, new_running_var)."""
    B, D = x.shape
    x_bytes = jnp.dtype(x.dtype).itemsize
    lg = log_gamma.reshape(1, D).astype(jnp.float32)
    bt = beta.reshape(1, D).astype(jnp.float32)

    tile_d = _pick_tile_d(B, D, x_bytes)
    nd = pl.cdiv(D, tile_d)

    if training:
        y, stats = pl.pallas_call(
            functools.partial(_fused_train_kernel, valid_d=D, eps=eps),
            out_shape=(jax.ShapeDtypeStruct((B, D), x.dtype),
                       jax.ShapeDtypeStruct((8, D), jnp.float32)),
            grid=(nd,),
            in_specs=[
                pl.BlockSpec((B, tile_d), lambda j: (0, j)),
                pl.BlockSpec((1, tile_d), lambda j: (0, j)),
                pl.BlockSpec((1, tile_d), lambda j: (0, j)),
            ],
            out_specs=[
                pl.BlockSpec((B, tile_d), lambda j: (0, j)),
                pl.BlockSpec((8, tile_d), lambda j: (0, j)),
            ],
            compiler_params=pltpu.CompilerParams(
                dimension_semantics=("parallel",),
                vmem_limit_bytes=_VMEM_LIMIT_BYTES),
        )(x, lg, bt)

        batch_mean = stats[_ROW_MEAN]
        batch_var = stats[_ROW_VAR]
        logdet = jnp.sum(stats[_ROW_LOGDET]).reshape(1)
        new_rm = (momentum * running_mean.astype(jnp.float32)
                  + (1.0 - momentum) * batch_mean).astype(running_mean.dtype)
        new_rv = (momentum * running_var.astype(jnp.float32)
                  + (1.0 - momentum) * batch_var).astype(running_var.dtype)
        return y, logdet, new_rm, new_rv

    # --- eval: O(D) prep in plain jnp, only the O(B*D) affine in Pallas -------
    rm = running_mean.astype(jnp.float32).reshape(1, D)
    rv = running_var.astype(jnp.float32).reshape(1, D)
    scale = jnp.exp(lg) * jax.lax.rsqrt(rv)                       # (1, D)
    shift = bt - rm * scale
    logdet = jnp.sum(lg - 0.5 * jnp.log(rv)).reshape(1)

    tile_b = _pick_tile_b(B, tile_d, x_bytes)
    nb = pl.cdiv(B, tile_b)
    y = pl.pallas_call(
        _affine_kernel,
        out_shape=jax.ShapeDtypeStruct((B, D), x.dtype),
        grid=(nb, nd),
        in_specs=[
            pl.BlockSpec((tile_b, tile_d), lambda i, j: (i, j)),
            pl.BlockSpec((1, tile_d), lambda i, j: (0, j)),
            pl.BlockSpec((1, tile_d), lambda i, j: (0, j)),
        ],
        out_specs=pl.BlockSpec((tile_b, tile_d), lambda i, j: (i, j)),
        compiler_params=pltpu.CompilerParams(
            dimension_semantics=("parallel", "parallel"),
            vmem_limit_bytes=_VMEM_LIMIT_BYTES),
    )(x, scale, shift)
    return y, logdet, running_mean, running_var


# ----------------------------------------------------------------------------
# Pure-JAX reference mirroring the PyTorch module ('direct' mode).
# ----------------------------------------------------------------------------
def reference_direct(x, log_gamma, beta, running_mean, running_var,
                     momentum, eps, training):
    if training:
        mean = x.mean(0)
        var = ((x - mean) ** 2).mean(0) + eps
        new_rm = momentum * running_mean + (1.0 - momentum) * mean
        new_rv = momentum * running_var + (1.0 - momentum) * var
    else:
        mean, var = running_mean, running_var
        new_rm, new_rv = running_mean, running_var
    x_hat = (x - mean) / jnp.sqrt(var)
    y = jnp.exp(log_gamma) * x_hat + beta
    logdet = jnp.sum(log_gamma - 0.5 * jnp.log(var), axis=-1, keepdims=True)
    return y, logdet, new_rm, new_rv


def _run_case(key, batch, num_inputs, momentum, eps):
    kx, kg, kb, km, kv = jax.random.split(key, 5)
    x = jax.random.normal(kx, (batch, num_inputs), jnp.float32)
    log_gamma = 0.1 * jax.random.normal(kg, (num_inputs,), jnp.float32)
    beta = 0.1 * jax.random.normal(kb, (num_inputs,), jnp.float32)
    running_mean = 0.1 * jax.random.normal(km, (num_inputs,), jnp.float32)
    running_var = jax.random.uniform(kv, (num_inputs,), jnp.float32,
                                     minval=0.5, maxval=1.5)

    # --- training-mode 'direct' forward -------------------------------------
    y, logdet, new_rm, new_rv = batch_norm_flow_direct(
        x, log_gamma, beta, running_mean, running_var,
        momentum=momentum, eps=eps, training=True)
    jax.block_until_ready((y, logdet, new_rm, new_rv))

    y_r, ld_r, rm_r, rv_r = reference_direct(
        x, log_gamma, beta, running_mean, running_var, momentum, eps, True)
    np.testing.assert_allclose(np.asarray(y), np.asarray(y_r), rtol=1e-4, atol=1e-5)
    np.testing.assert_allclose(np.asarray(logdet), np.asarray(ld_r), rtol=1e-4, atol=1e-5)
    np.testing.assert_allclose(np.asarray(new_rm), np.asarray(rm_r), rtol=1e-4, atol=1e-5)
    np.testing.assert_allclose(np.asarray(new_rv), np.asarray(rv_r), rtol=1e-4, atol=1e-5)

    # --- eval-mode 'direct' forward (uses running statistics) ---------------
    y_e, ld_e, _, _ = batch_norm_flow_direct(
        x, log_gamma, beta, running_mean, running_var,
        momentum=momentum, eps=eps, training=False)
    jax.block_until_ready((y_e, ld_e))

    y_er, ld_er, _, _ = reference_direct(
        x, log_gamma, beta, running_mean, running_var, momentum, eps, False)
    np.testing.assert_allclose(np.asarray(y_e), np.asarray(y_er), rtol=1e-4, atol=1e-5)
    np.testing.assert_allclose(np.asarray(ld_e), np.asarray(ld_er), rtol=1e-4, atol=1e-5)

    assert y.shape == (batch, num_inputs) and logdet.shape == (1,)


if __name__ == "__main__":
    key = jax.random.PRNGKey(0)
    k1, k2 = jax.random.split(key)

    # Tiny-D path (single full-width grid step), matches the module's typical use.
    _run_case(k1, batch=192, num_inputs=8, momentum=0.1, eps=1e-5)
    # Lane-dense multi-tile path with a ragged last feature tile (D=384, tile_d=256).
    _run_case(k2, batch=64, num_inputs=384, momentum=0.1, eps=1e-5)

    print("KERNEL_OK")
</pallas_src>

<mosaic_0001>
module attributes {stable_mosaic.version = 11 : i64} {
  func.func @_fused_train_kernel(%arg0: i32, %arg1: memref<192x8xf32, #tpu.memory_space<vmem>>, %arg2: memref<1x8xf32, #tpu.memory_space<vmem>>, %arg3: memref<1x8xf32, #tpu.memory_space<vmem>>, %arg4: memref<192x8xf32, #tpu.memory_space<vmem>>, %arg5: memref<8x8xf32, #tpu.memory_space<vmem>>) attributes {dimension_semantics = [#tpu.dimension_semantics<parallel>], iteration_bounds = array<i64: 1>, scalar_prefetch = 0 : i64, scratch_operands = 0 : i64, tpu.core_type = #tpu.core_type<tc>, window_params = [{transform_indices = @transform_0, window_bounds = array<i64: 192, 8>}, {transform_indices = @transform_1, window_bounds = array<i64: 1, 8>}, {transform_indices = @transform_2, window_bounds = array<i64: 1, 8>}, {transform_indices = @transform_3, window_bounds = array<i64: 192, 8>}, {transform_indices = @transform_4, window_bounds = array<i64: 8, 8>}]} {
    %c0 = arith.constant 0 : index
    %c0_0 = arith.constant 0 : index
    %0 = vector.load %arg1[%c0, %c0_0] : memref<192x8xf32, #tpu.memory_space<vmem>>, vector<192x8xf32>
    %cst = arith.constant dense<0.000000e+00> : vector<8xf32>
    %1 = vector.multi_reduction <add>, %0, %cst [0] : vector<192x8xf32> to vector<8xf32>
    %2 = vector.shape_cast %1 : vector<8xf32> to vector<1x8xf32>
    %cst_1 = arith.constant 0.00520833349 : f32
    %3 = vector.broadcast %cst_1 : f32 to vector<1x8xf32>
    %4 = arith.mulf %2, %3 : vector<1x8xf32>
    %5 = vector.broadcast %4 : vector<1x8xf32> to vector<192x8xf32>
    %6 = arith.subf %0, %5 : vector<192x8xf32>
    %7 = arith.mulf %6, %6 : vector<192x8xf32>
    %cst_2 = arith.constant dense<0.000000e+00> : vector<8xf32>
    %8 = vector.multi_reduction <add>, %7, %cst_2 [0] : vector<192x8xf32> to vector<8xf32>
    %9 = vector.shape_cast %8 : vector<8xf32> to vector<1x8xf32>
    %cst_3 = arith.constant 0.00520833349 : f32
    %10 = vector.broadcast %cst_3 : f32 to vector<1x8xf32>
    %11 = arith.mulf %9, %10 : vector<1x8xf32>
    %cst_4 = arith.constant 9.99999974E-6 : f32
    %12 = vector.broadcast %cst_4 : f32 to vector<1x8xf32>
    %13 = arith.addf %11, %12 : vector<1x8xf32>
    %c0_5 = arith.constant 0 : index
    %c0_6 = arith.constant 0 : index
    %14 = vector.load %arg2[%c0_5, %c0_6] : memref<1x8xf32, #tpu.memory_space<vmem>>, vector<1x8xf32>
    %15 = math.exp %14 : vector<1x8xf32>
    %16 = math.rsqrt %13 : vector<1x8xf32>
    %17 = arith.mulf %15, %16 : vector<1x8xf32>
    %18 = vector.broadcast %17 : vector<1x8xf32> to vector<192x8xf32>
    %19 = arith.mulf %6, %18 : vector<192x8xf32>
    %c0_7 = arith.constant 0 : index
    %c0_8 = arith.constant 0 : index
    %20 = vector.load %arg3[%c0_7, %c0_8] : memref<1x8xf32, #tpu.memory_space<vmem>>, vector<1x8xf32>
    %21 = vector.broadcast %20 : vector<1x8xf32> to vector<192x8xf32>
    %22 = arith.addf %19, %21 : vector<192x8xf32>
    %c0_9 = arith.constant 0 : index
    %c0_10 = arith.constant 0 : index
    %23 = vector.load %arg4[%c0_9, %c0_10] : memref<192x8xf32, #tpu.memory_space<vmem>>, vector<192x8xf32>
    tpu.vector_store %arg4[%c0_9, %c0_10], %22 {strides = array<i32>} : memref<192x8xf32, #tpu.memory_space<vmem>>, vector<192x8xf32>,
    %24 = tpu.iota {dimensions = array<i32: 1>} : vector<1x8xi32>
    %c8_i32 = arith.constant 8 : i32
    %25 = arith.muli %arg0, %c8_i32 : i32
    %26 = vector.broadcast %25 : i32 to vector<1x8xi32>
    %27 = arith.addi %24, %26 : vector<1x8xi32>
    %c8_i32_11 = arith.constant 8 : i32
    %28 = vector.broadcast %c8_i32_11 : i32 to vector<1x8xi32>
    %29 = arith.cmpi slt, %27, %28 : vector<1x8xi32>
    %30 = math.log %13 : vector<1x8xf32>
    %cst_12 = arith.constant 5.000000e-01 : f32
    %31 = vector.broadcast %cst_12 : f32 to vector<1x8xf32>
    %32 = arith.mulf %31, %30 : vector<1x8xf32>
    %33 = arith.subf %14, %32 : vector<1x8xf32>
    %cst_13 = arith.constant 0.000000e+00 : f32
    %34 = vector.broadcast %cst_13 : f32 to vector<1x8xf32>
    %35 = arith.select %29, %33, %34 : vector<1x8xi1>, vector<1x8xf32>
    %c0_14 = arith.constant 0 : index
    %c0_15 = arith.constant 0 : index
    %36 = vector.load %arg5[%c0_14, %c0_15] : memref<8x8xf32, #tpu.memory_space<vmem>>, vector<1x8xf32>
    tpu.vector_store %arg5[%c0_14, %c0_15], %4 {strides = array<i32>} : memref<8x8xf32, #tpu.memory_space<vmem>>, vector<1x8xf32>,
    %c1 = arith.constant 1 : index
    %c0_16 = arith.constant 0 : index
    %37 = vector.load %arg5[%c1, %c0_16] : memref<8x8xf32, #tpu.memory_space<vmem>>, vector<1x8xf32>
    tpu.vector_store %arg5[%c1, %c0_16], %13 {strides = array<i32>} : memref<8x8xf32, #tpu.memory_space<vmem>>, vector<1x8xf32>,
    %c2 = arith.constant 2 : index
    %c0_17 = arith.constant 0 : index
    %38 = vector.load %arg5[%c2, %c0_17] : memref<8x8xf32, #tpu.memory_space<vmem>>, vector<1x8xf32>
    tpu.vector_store %arg5[%c2, %c0_17], %35 {strides = array<i32>} : memref<8x8xf32, #tpu.memory_space<vmem>>, vector<1x8xf32>,
    %cst_18 = arith.constant 0.000000e+00 : f32
    %39 = vector.broadcast %cst_18 : f32 to vector<5x8xf32>
    %c3 = arith.constant 3 : index
    %c0_19 = arith.constant 0 : index
    %40 = vector.load %arg5[%c3, %c0_19] : memref<8x8xf32, #tpu.memory_space<vmem>>, vector<5x8xf32>
    tpu.vector_store %arg5[%c3, %c0_19], %39 {strides = array<i32>} : memref<8x8xf32, #tpu.memory_space<vmem>>, vector<5x8xf32>,
    return
  }
  func.func @transform_0(%arg0: i32) -> (i32, i32) {
    %c0_i32 = arith.constant 0 : i32
    %c0_i32_0 = arith.constant 0 : i32
    return %c0_i32, %arg0 : i32, i32
  }
  func.func @transform_1(%arg0: i32) -> (i32, i32) {
    %c0_i32 = arith.constant 0 : i32
    %c0_i32_0 = arith.constant 0 : i32
    return %c0_i32, %arg0 : i32, i32
  }
  func.func @transform_2(%arg0: i32) -> (i32, i32) {
    %c0_i32 = arith.constant 0 : i32
    %c0_i32_0 = arith.constant 0 : i32
    return %c0_i32, %arg0 : i32, i32
  }
  func.func @transform_3(%arg0: i32) -> (i32, i32) {
    %c0_i32 = arith.constant 0 : i32
    %c0_i32_0 = arith.constant 0 : i32
    return %c0_i32, %arg0 : i32, i32
  }
  func.func @transform_4(%arg0: i32) -> (i32, i32) {
    %c0_i32 = arith.constant 0 : i32
    %c0_i32_0 = arith.constant 0 : i32
    return %c0_i32, %arg0 : i32, i32
  }
}

</mosaic_0001>

<llo_original>
// kernel: tpu_custom_call.1
$region0: #{tpu_custom_call.1}
  #allocation0 [shape = 'u32[]', space=smem, size = 0x4, offset = 0x4, fixed_abs, tag = 'smem constant byte address 0x4 - core index']
  #allocation1 [shape = 'u32[72,128]{1,0:T(1,128)}', space=vmem, size = 0x9000, scoped, tag = 'internal scratch']
  %s0 = inlined_call_operand.vmem [shape: f32[192,8], index: 0, kind: input, shape index: {}]
  %s1 = inlined_call_operand.vmem [shape: f32[1,8], index: 1, kind: input, shape index: {}]
  %s2 = inlined_call_operand.vmem [shape: f32[1,8], index: 2, kind: input, shape index: {}]
  %s3 = inlined_call_operand.vmem [shape: f32[192,8], index: 3, kind: output, shape index: {0}]
  %s4 = inlined_call_operand.hbm [shape: f32[8,8], index: 4, kind: output, shape index: {1}]
  %5 = xla_tuple %s3, %s4
  %s6 = sld [smem:[#allocation0]]
  $region30: #{tpu_custom_call.1} parent=0
    _
  %s8 = ssub.s32 1, %s6
  %s9 = scalar_select 0, %s8, %s6
  $region1: #{tpu_custom_call.1} parent=0
    #allocation2 [shape = 'u8[4096]{0}', space=vmem, size = 0x1000, scoped, tag = 'output window, operand 1, single buffered']
    #allocation3 [shape = 's32[1]{0}', space=sflag, size = 0x4, scoped, tag = 'scoped memory for tpu_custom_call.1']
    %10 = vsyncpa [#allocation3], 0
    // Predicated region
    $region2: #{tpu_custom_call.1} parent=1 // pred_check
      _
    $region3: #{tpu_custom_call.1} parent=1 // pred_check_branch
      %12 = sbr.rel (0) target = $region5
    $region4: #{tpu_custom_call.1} parent=1 // pred_region
      _
    $region5: #{tpu_custom_call.1} parent=1 // pred_fallthru
      _
    // Predicated region
    $region6: #{tpu_custom_call.1} parent=1 // pred_check
      _
    $region7: #{tpu_custom_call.1} parent=1 // pred_check_branch
      %14 = sbr.rel (0) target = $region9
    $region8: #{tpu_custom_call.1} parent=1 // pred_region
      _
    $region9: #{tpu_custom_call.1} parent=1 // pred_fallthru
      _
    // Predicated region
    $region10: #{tpu_custom_call.1} parent=1 // pred_check
      _
    $region11: #{tpu_custom_call.1} parent=1 // pred_check_branch
      %16 = sbr.rel (0) target = $region13
    $region12: #{tpu_custom_call.1} parent=1 // pred_region
      _
    $region13: #{tpu_custom_call.1} parent=1 // pred_fallthru
      _
    %v17 = vld [vmem:[%s0] sm:$0xff]
    %v18 = vld [vmem:[%s0 + $0x8] sm:$0xff]
    %v19 = vld [vmem:[%s0 + $0x10] sm:$0xff]
    %v20 = vld [vmem:[%s0 + $0x18] sm:$0xff]
    %v21 = vld [vmem:[%s0 + $0x20] sm:$0xff]
    %v22 = vld [vmem:[%s0 + $0x28] sm:$0xff]
    %v23 = vld [vmem:[%s0 + $0x30] sm:$0xff]
    %v24 = vld [vmem:[%s0 + $0x38] sm:$0xff]
    %v25 = vld [vmem:[%s0 + $0x40] sm:$0xff]
    %v26 = vld [vmem:[%s0 + $0x48] sm:$0xff]
    %v27 = vld [vmem:[%s0 + $0x50] sm:$0xff]
    %v28 = vld [vmem:[%s0 + $0x58] sm:$0xff]
    %v29 = vld [vmem:[%s0 + $0x60] sm:$0xff]
    %v30 = vld [vmem:[%s0 + $0x68] sm:$0xff]
    %v31 = vld [vmem:[%s0 + $0x70] sm:$0xff]
    %v32 = vld [vmem:[%s0 + $0x78] sm:$0xff]
    %v33 = vld [vmem:[%s0 + $0x80] sm:$0xff]
    %v34 = vld [vmem:[%s0 + $0x88] sm:$0xff]
    %v35 = vld [vmem:[%s0 + $0x90] sm:$0xff]
    %v36 = vld [vmem:[%s0 + $0x98] sm:$0xff]
    %v37 = vld [vmem:[%s0 + $0xa0] sm:$0xff]
    %v38 = vld [vmem:[%s0 + $0xa8] sm:$0xff]
    %v39 = vld [vmem:[%s0 + $0xb0] sm:$0xff]
    %v40 = vld [vmem:[%s0 + $0xb8] sm:$0xff]
    %vm41 = vcmask 64512
    %v42 = vsel %vm41, %v17, 0.0
    %v43 = vsel %vm41, %v18, 0.0
    %v44 = vadd.f32 %v42, %v43
    %v45 = vsel %vm41, %v19, 0.0
    %v46 = vadd.f32 %v44, %v45
    %v47 = vsel %vm41, %v20, 0.0
    %v48 = vadd.f32 %v46, %v47
    %v49 = vsel %vm41, %v21, 0.0
    %v50 = vadd.f32 %v48, %v49
    %v51 = vsel %vm41, %v22, 0.0
    %v52 = vadd.f32 %v50, %v51
    %v53 = vsel %vm41, %v23, 0.0
    %v54 = vadd.f32 %v52, %v53
    %v55 = vsel %vm41, %v24, 0.0
    %v56 = vadd.f32 %v54, %v55
    %v57 = vsel %vm41, %v25, 0.0
    %v58 = vadd.f32 %v56, %v57
    %v59 = vsel %vm41, %v26, 0.0
    %v60 = vadd.f32 %v58, %v59
    %v61 = vsel %vm41, %v27, 0.0
    %v62 = vadd.f32 %v60, %v61
    %v63 = vsel %vm41, %v28, 0.0
    %v64 = vadd.f32 %v62, %v63
    %v65 = vsel %vm41, %v29, 0.0
    %v66 = vadd.f32 %v64, %v65
    %v67 = vsel %vm41, %v30, 0.0
    %v68 = vadd.f32 %v66, %v67
    %v69 = vsel %vm41, %v31, 0.0
    %v70 = vadd.f32 %v68, %v69
    %v71 = vsel %vm41, %v32, 0.0
    %v72 = vadd.f32 %v70, %v71
    %v73 = vsel %vm41, %v33, 0.0
    %v74 = vadd.f32 %v72, %v73
    %v75 = vsel %vm41, %v34, 0.0
    %v76 = vadd.f32 %v74, %v75
    %v77 = vsel %vm41, %v35, 0.0
    %v78 = vadd.f32 %v76, %v77
    %v79 = vsel %vm41, %v36, 0.0
    %v80 = vadd.f32 %v78, %v79
    %v81 = vsel %vm41, %v37, 0.0
    %v82 = vadd.f32 %v80, %v81
    %v83 = vsel %vm41, %v38, 0.0
    %v84 = vadd.f32 %v82, %v83
    %v85 = vsel %vm41, %v39, 0.0
    %v86 = vadd.f32 %v84, %v85
    %v87 = vsel %vm41, %v40, 0.0
    %v88 = vadd.f32 %v86, %v87
    %v89 = vrot.slane %v88, 4
    %v90 = vadd.f32 %v88, %v89
    %v91 = vrot.slane %v90, 2
    %v92 = vadd.f32 %v90, %v91
    %v93 = vrot.slane %v92, 1
    %v94 = vadd.f32 %v92, %v93
    %v95 = vmul.f32 %v94, 0.0052083335
    %v96 = vsub.f32 %v17, %v95
    %v97 = vsub.f32 %v18, %v95
    %v98 = vsub.f32 %v19, %v95
    %v99 = vsub.f32 %v20, %v95
    %v100 = vsub.f32 %v21, %v95
    %v101 = vsub.f32 %v22, %v95
    %v102 = vsub.f32 %v23, %v95
    %v103 = vsub.f32 %v24, %v95
    %v104 = vsub.f32 %v25, %v95
    %v105 = vsub.f32 %v26, %v95
    %v106 = vsub.f32 %v27, %v95
    %v107 = vsub.f32 %v28, %v95
    %v108 = vsub.f32 %v29, %v95
    %v109 = vsub.f32 %v30, %v95
    %v110 = vsub.f32 %v31, %v95
    %v111 = vsub.f32 %v32, %v95
    %v112 = vsub.f32 %v33, %v95
    %v113 = vsub.f32 %v34, %v95
    %v114 = vsub.f32 %v35, %v95
    %v115 = vsub.f32 %v36, %v95
    %v116 = vsub.f32 %v37, %v95
    %v117 = vsub.f32 %v38, %v95
    %v118 = vsub.f32 %v39, %v95
    %v119 = vsub.f32 %v40, %v95
    %v120 = vmul.f32 %v96, %v96
    %v121 = vmul.f32 %v97, %v97
    %v122 = vmul.f32 %v98, %v98
    %v123 = vmul.f32 %v99, %v99
    %v124 = vmul.f32 %v100, %v100
    %v125 = vmul.f32 %v101, %v101
    %v126 = vmul.f32 %v102, %v102
    %v127 = vmul.f32 %v103, %v103
    %v128 = vmul.f32 %v104, %v104
    %v129 = vmul.f32 %v105, %v105
    %v130 = vmul.f32 %v106, %v106
    %v131 = vmul.f32 %v107, %v107
    %v132 = vmul.f32 %v108, %v108
    %v133 = vmul.f32 %v109, %v109
    %v134 = vmul.f32 %v110, %v110
    %v135 = vmul.f32 %v111, %v111
    %v136 = vmul.f32 %v112, %v112
    %v137 = vmul.f32 %v113, %v113
    %v138 = vmul.f32 %v114, %v114
    %v139 = vmul.f32 %v115, %v115
    %v140 = vmul.f32 %v116, %v116
    %v141 = vmul.f32 %v117, %v117
    %v142 = vmul.f32 %v118, %v118
    %v143 = vmul.f32 %v119, %v119
    %v144 = vsel %vm41, %v120, 0.0
    %v145 = vsel %vm41, %v121, 0.0
    %v146 = vadd.f32 %v144, %v145
    %v147 = vsel %vm41, %v122, 0.0
    %v148 = vadd.f32 %v146, %v147
    %v149 = vsel %vm41, %v123, 0.0
    %v150 = vadd.f32 %v148, %v149
    %v151 = vsel %vm41, %v124, 0.0
    %v152 = vadd.f32 %v150, %v151
    %v153 = vsel %vm41, %v125, 0.0
    %v154 = vadd.f32 %v152, %v153
    %v155 = vsel %vm41, %v126, 0.0
    %v156 = vadd.f32 %v154, %v155
    %v157 = vsel %vm41, %v127, 0.0
    %v158 = vadd.f32 %v156, %v157
    %v159 = vsel %vm41, %v128, 0.0
    %v160 = vadd.f32 %v158, %v159
    %v161 = vsel %vm41, %v129, 0.0
    %v162 = vadd.f32 %v160, %v161
    %v163 = vsel %vm41, %v130, 0.0
    %v164 = vadd.f32 %v162, %v163
    %v165 = vsel %vm41, %v131, 0.0
    %v166 = vadd.f32 %v164, %v165
    %v167 = vsel %vm41, %v132, 0.0
    %v168 = vadd.f32 %v166, %v167
    %v169 = vsel %vm41, %v133, 0.0
    %v170 = vadd.f32 %v168, %v169
    %v171 = vsel %vm41, %v134, 0.0
    %v172 = vadd.f32 %v170, %v171
    %v173 = vsel %vm41, %v135, 0.0
    %v174 = vadd.f32 %v172, %v173
    %v175 = vsel %vm41, %v136, 0.0
    %v176 = vadd.f32 %v174, %v175
    %v177 = vsel %vm41, %v137, 0.0
    %v178 = vadd.f32 %v176, %v177
    %v179 = vsel %vm41, %v138, 0.0
    %v180 = vadd.f32 %v178, %v179
    %v181 = vsel %vm41, %v139, 0.0
    %v182 = vadd.f32 %v180, %v181
    %v183 = vsel %vm41, %v140, 0.0
    %v184 = vadd.f32 %v182, %v183
    %v185 = vsel %vm41, %v141, 0.0
    %v186 = vadd.f32 %v184, %v185
    %v187 = vsel %vm41, %v142, 0.0
    %v188 = vadd.f32 %v186, %v187
    %v189 = vsel %vm41, %v143, 0.0
    %v190 = vadd.f32 %v188, %v189
    %v191 = vrot.slane %v190, 4
    %v192 = vadd.f32 %v190, %v191
    %v193 = vrot.slane %v192, 2
    %v194 = vadd.f32 %v192, %v193
    %v195 = vrot.slane %v194, 1
    %v196 = vadd.f32 %v194, %v195
    %v197 = vmul.f32 %v196, 0.0052083335
    %v198 = vadd.f32 %v197, 1e-05
    %v199 = vld [vmem:[%s1] sm:$0x1]
    %v200 = vmul.f32 %v199, 1.442695
    %v201 = vpow.pop %v200
    %v202 = vrsqrt.pop %v198
    %v203 = vmul.f32 %v202, %v198
    %v204 = vmul.f32 %v203, %v202
    %v205 = vmul.f32 0.5, %v204
    %v206 = vsub.f32 1.5, %v205
    %v207 = vmul.f32 %v202, %v206
    %vm208 = vweird.f32 %v198
    %vm209 = vweird.f32 %v202
    %vm210 = vmor %vm208, %vm209
    %v211 = vsel %vm210, %v202, %v207
    %v212 = vmul.f32 %v201, %v211
    %v214 = vperm.slane %v212, 0
    %v216 = vmul.f32 %v96, %v214
    %v217 = vmul.f32 %v97, %v214
    %v218 = vmul.f32 %v98, %v214
    %v219 = vmul.f32 %v99, %v214
    %v220 = vmul.f32 %v100, %v214
    %v221 = vmul.f32 %v101, %v214
    %v222 = vmul.f32 %v102, %v214
    %v223 = vmul.f32 %v103, %v214
    %v224 = vmul.f32 %v104, %v214
    %v225 = vmul.f32 %v105, %v214
    %v226 = vmul.f32 %v106, %v214
    %v227 = vmul.f32 %v107, %v214
    %v228 = vmul.f32 %v108, %v214
    %v229 = vmul.f32 %v109, %v214
    %v230 = vmul.f32 %v110, %v214
    %v231 = vmul.f32 %v111, %v214
    %v232 = vmul.f32 %v112, %v214
    %v233 = vmul.f32 %v113, %v214
    %v234 = vmul.f32 %v114, %v214
    %v235 = vmul.f32 %v115, %v214
    %v236 = vmul.f32 %v116, %v214
    %v237 = vmul.f32 %v117, %v214
    %v238 = vmul.f32 %v118, %v214
    %v239 = vmul.f32 %v119, %v214
    %v240 = vld [vmem:[%s2] sm:$0x1]
    %v242 = vperm.slane %v240, 0
    %v244 = vadd.f32 %v216, %v242
    %v245 = vadd.f32 %v217, %v242
    %v246 = vadd.f32 %v218, %v242
    %v247 = vadd.f32 %v219, %v242
    %v248 = vadd.f32 %v220, %v242
    %v249 = vadd.f32 %v221, %v242
    %v250 = vadd.f32 %v222, %v242
    %v251 = vadd.f32 %v223, %v242
    %v252 = vadd.f32 %v224, %v242
    %v253 = vadd.f32 %v225, %v242
    %v254 = vadd.f32 %v226, %v242
    %v255 = vadd.f32 %v227, %v242
    %v256 = vadd.f32 %v228, %v242
    %v257 = vadd.f32 %v229, %v242
    %v258 = vadd.f32 %v230, %v242
    %v259 = vadd.f32 %v231, %v242
    %v260 = vadd.f32 %v232, %v242
    %v261 = vadd.f32 %v233, %v242
    %v262 = vadd.f32 %v234, %v242
    %v263 = vadd.f32 %v235, %v242
    %v264 = vadd.f32 %v236, %v242
    %v265 = vadd.f32 %v237, %v242
    %v266 = vadd.f32 %v238, %v242
    %v267 = vadd.f32 %v239, %v242
    %268 = vst.msk [vmem:[%s3] sm:$0xff] %vm41, %v244
    %269 = vst.msk [vmem:[%s3 + $0x8] sm:$0xff] %vm41, %v245
    %270 = vst.msk [vmem:[%s3 + $0x10] sm:$0xff] %vm41, %v246
    %271 = vst.msk [vmem:[%s3 + $0x18] sm:$0xff] %vm41, %v247
    %272 = vst.msk [vmem:[%s3 + $0x20] sm:$0xff] %vm41, %v248
    %273 = vst.msk [vmem:[%s3 + $0x28] sm:$0xff] %vm41, %v249
    %274 = vst.msk [vmem:[%s3 + $0x30] sm:$0xff] %vm41, %v250
    %275 = vst.msk [vmem:[%s3 + $0x38] sm:$0xff] %vm41, %v251
    %276 = vst.msk [vmem:[%s3 + $0x40] sm:$0xff] %vm41, %v252
    %277 = vst.msk [vmem:[%s3 + $0x48] sm:$0xff] %vm41, %v253
    %278 = vst.msk [vmem:[%s3 + $0x50] sm:$0xff] %vm41, %v254
    %279 = vst.msk [vmem:[%s3 + $0x58] sm:$0xff] %vm41, %v255
    %280 = vst.msk [vmem:[%s3 + $0x60] sm:$0xff] %vm41, %v256
    %281 = vst.msk [vmem:[%s3 + $0x68] sm:$0xff] %vm41, %v257
    %282 = vst.msk [vmem:[%s3 + $0x70] sm:$0xff] %vm41, %v258
    %283 = vst.msk [vmem:[%s3 + $0x78] sm:$0xff] %vm41, %v259
    %284 = vst.msk [vmem:[%s3 + $0x80] sm:$0xff] %vm41, %v260
    %285 = vst.msk [vmem:[%s3 + $0x88] sm:$0xff] %vm41, %v261
    %286 = vst.msk [vmem:[%s3 + $0x90] sm:$0xff] %vm41, %v262
    %287 = vst.msk [vmem:[%s3 + $0x98] sm:$0xff] %vm41, %v263
    %288 = vst.msk [vmem:[%s3 + $0xa0] sm:$0xff] %vm41, %v264
    %289 = vst.msk [vmem:[%s3 + $0xa8] sm:$0xff] %vm41, %v265
    %290 = vst.msk [vmem:[%s3 + $0xb0] sm:$0xff] %vm41, %v266
    %291 = vst.msk [vmem:[%s3 + $0xb8] sm:$0xff] %vm41, %v267
    %v292 = vlaneseq
    %v293 = vand.u32 %v292, 127
    %s294 = smul.u32 0, 8
    %v295 = vstv %s294
    %v296 = vadd.s32 %v293, %v295
    %vm297 = vcmp.lt.s32.totalorder %v296, 8
    %v298 = vlog2.pop %v198
    %v299 = vmul.f32 %v298, 0.6931472
    %v300 = vmul.f32 %v299, 0.5
    %v301 = vsub.f32 %v199, %v300
    %v302 = vsel %vm297, %v301, 0.0
    %vm303 = vcmask 57344
    %304 = vst.msk [vmem:[#allocation2] sm:$0x1] %vm303, %v95
    %305 = vst.msk [vmem:[#allocation2 + $0x1] sm:$0x1] %vm303, %v198
    %306 = vst.msk [vmem:[#allocation2 + $0x2] sm:$0x1] %vm303, %v302
    %vm307 = vcmask 61440
    %308 = vst.msk [vmem:[#allocation2 + $0x3] sm:$0x1f] %vm307, 0.0
    // Predicated region
    $region14: #{tpu_custom_call.1} parent=1 // pred_check
      _
    $region15: #{tpu_custom_call.1} parent=1 // pred_check_branch
      %310 = sbr.rel (0) target = $region17
    $region16: #{tpu_custom_call.1} parent=1 // pred_region
      _
    $region17: #{tpu_custom_call.1} parent=1 // pred_fallthru
      _
    // Predicated region
    $region18: #{tpu_custom_call.1} parent=1 // pred_check
      _
    $region19: #{tpu_custom_call.1} parent=1 // pred_check_branch
      %312 = sbr.rel (0) target = $region21
    $region20: #{tpu_custom_call.1} parent=1 // pred_region
      %314 = vsyncadd [#allocation3], 0
      %s316 = sshll.u32 [#allocation2], 4
      %s317 = int_to_ptr.vmem [resolvable:$true] %s316
      %s318 = sshll.u32 %s4, 4
      %s319 = int_to_ptr.hbm [resolvable:$true] %s318
      %321 = dma.vmem_to_hbm [thread:$0]  %s317, 128, %s319, [#allocation3]
    $region21: #{tpu_custom_call.1} parent=1 // pred_fallthru
      _
    // Predicated region
    $region22: #{tpu_custom_call.1} parent=1 // pred_check
      _
    $region23: #{tpu_custom_call.1} parent=1 // pred_check_branch
      %323 = sbr.rel (0) target = $region25
    $region24: #{tpu_custom_call.1} parent=1 // pred_region
      _
    $region25: #{tpu_custom_call.1} parent=1 // pred_fallthru
      _
    // Predicated region
    $region26: #{tpu_custom_call.1} parent=1 // pred_check
      _
    $region27: #{tpu_custom_call.1} parent=1 // pred_check_branch
      %325 = sbr.rel (0) target = $region29
    $region28: #{tpu_custom_call.1} parent=1 // pred_region
      %327 = dma.done [#allocation3], 128
    $region29: #{tpu_custom_call.1} parent=1 // pred_fallthru
      _
    %328 = vsyncpa [#allocation3], 1

</llo_original>
